<compile_context>
chip_gen: v7x
topology: tpu7x:2x2x1
jax: 0.10.0
libtpu: 0.0.40
codegen_flags: <defaults>
</compile_context>

<pallas_src>
import numpy as np
import jax
import jax.numpy as jnp
from jax import lax
from jax.experimental import pallas as pl
from jax.experimental.pallas import tpu as pltpu


def _round_up(v, m):
    return (v + m - 1) // m * m


def _make_kernel(tm, tk, nb_max, eps, compute_dtype):
    def kernel(blk_k_ref, nblk_ref, adj_ref, x_ref, w1_ref, b1_ref,
               w2_ref, b2_ref, out_ref, acc_ref):
        i = pl.program_id(0)
        j = pl.program_id(1)

        @pl.when(j == 0)
        def _init():
            # GIN self term (exact; nothing non-integer folded into int8 A).
            row0 = pl.multiple_of(i * tm, tm)
            acc_ref[...] = (1.0 + eps) * x_ref[pl.ds(row0, tm), :].astype(
                jnp.float32)

        @pl.when(j < nblk_ref[i])
        def _accumulate():
            # Neighbor sum over one nonzero adjacency block: int8 -> bf16
            # cast on the VPU, matmul on the MXU with f32 accumulation.
            kblk = blk_k_ref[i * nb_max + j]
            col0 = pl.multiple_of(kblk * tk, tk)
            a = adj_ref[...].astype(jnp.float32).astype(compute_dtype)
            acc_ref[...] += jnp.dot(a, x_ref[pl.ds(col0, tk), :],
                                    preferred_element_type=jnp.float32)

        @pl.when(j == pl.num_programs(1) - 1)
        def _epilogue():
            # gin_nn: Linear -> ReLU -> Linear, then GeneralLayer post-layer
            # ReLU and row-wise L2 normalization (padded cols are zero).
            h = acc_ref[...].astype(compute_dtype)
            h1 = jnp.dot(h, w1_ref[...], preferred_element_type=jnp.float32)
            h1 = jnp.maximum(h1 + b1_ref[...], 0.0)
            y = jnp.dot(h1.astype(compute_dtype), w2_ref[...],
                        preferred_element_type=jnp.float32) + b2_ref[...]
            y = jnp.maximum(y, 0.0)
            sumsq = jnp.sum(y * y, axis=-1, keepdims=True)
            inv = lax.rsqrt(jnp.maximum(sumsq, 1e-24))  # == 1/max(||y||,1e-12)
            out_ref[...] = (y * inv).astype(out_ref.dtype)

    return kernel


def _pick_tiles(n):
    """Choose (tm, tk, n_pad, vmem_capacity)."""
    n_pad_lane = _round_up(max(n, 1), 128)
    tk = min(512, n_pad_lane)                 # reduction-column tile
    n_pad = _round_up(max(n, 1), tk)
    vmem_cap = 64 * 1024 * 1024               # conservative (v7x) default
    try:
        vmem_cap = int(getattr(pltpu.get_tpu_info(), "vmem_capacity_bytes",
                               vmem_cap))
    except Exception:
        pass
    tm_cap = 1024 if vmem_cap >= 100 * 1024 * 1024 else 512   # bigger on v5e/v6e
    # >= 2 row tiles so the "parallel" axis feeds both TCs on v7x; multiples
    # of 32 keep the int8 A blocks sublane-tile aligned.
    tm = n_pad
    for cand in (1024, 512, 256, 128, 64, 32):
        if cand <= tm_cap and cand <= n_pad // 2 and n_pad % cand == 0:
            tm = cand
            break
    return tm, tk, n_pad, vmem_cap


def build_block_adjacency(edge_index, n_pad, tm, tk):
    """Dense int8 adjacency (A[dst, src] = edge multiplicity, zero padded to
    n_pad) plus per-row-tile lists of nonzero column blocks.

    For a static graph this can be computed once and cached across forward
    calls (it needs concrete host-side edge_index, so it does not trace).
    int8 is exact for edge multiplicities <= 127.
    """
    src = np.asarray(edge_index[0]).astype(np.int64)
    dst = np.asarray(edge_index[1]).astype(np.int64)
    counts = np.zeros((n_pad, n_pad), np.int32)
    np.add.at(counts, (dst, src), 1)
    adj = np.clip(counts, 0, 127).astype(np.int8)

    n_i, n_k = n_pad // tm, n_pad // tk
    blk_mask = counts.reshape(n_i, tm, n_k, tk).sum(axis=(1, 3)) > 0
    nblk = blk_mask.sum(axis=1).astype(np.int32)
    nb_max = max(1, int(nblk.max()))
    blk_k = np.zeros((n_i, nb_max), np.int32)
    for i in range(n_i):
        ks = np.nonzero(blk_mask[i])[0]
        if ks.size:
            blk_k[i, :ks.size] = ks
            blk_k[i, ks.size:] = ks[-1]   # repeat last -> pipeline elides DMA
    return (jnp.asarray(adj), jnp.asarray(blk_k.reshape(-1)),
            jnp.asarray(nblk), nb_max)


def general_layer(x, edge_index, w1, b1, w2, b2, eps=0.0,
                  compute_dtype=jnp.bfloat16, out_dtype=jnp.bfloat16):
    """x: [N, dim_in] f32, edge_index: [2, E] int32 (row0=src, row1=dst).

    Returns [N, dim_out] in out_dtype (bf16 default: the output is
    L2-normalized, so bf16 keeps ample precision and halves writeback bytes).
    """
    n, dim_in = x.shape
    dim_hid = w1.shape[1]
    dim_out = w2.shape[1]

    # Lane-dense (128-multiple) feature dims.
    f_in = _round_up(dim_in, 128)
    f_hid = _round_up(dim_hid, 128)
    f_out = _round_up(dim_out, 128)

    tm, tk, n_pad, vmem_cap = _pick_tiles(n)
    n_i = n_pad // tm
    adj, blk_k, nblk, nb_max = build_block_adjacency(edge_index, n_pad, tm, tk)

    xp = jnp.zeros((n_pad, f_in), compute_dtype).at[:n, :dim_in].set(
        x.astype(compute_dtype))
    w1p = jnp.zeros((f_in, f_hid), compute_dtype).at[:dim_in, :dim_hid].set(
        w1.astype(compute_dtype))
    b1p = jnp.zeros((1, f_hid), jnp.float32).at[0, :dim_hid].set(b1)
    w2p = jnp.zeros((f_hid, f_out), compute_dtype).at[:dim_hid, :dim_out].set(
        w2.astype(compute_dtype))
    b2p = jnp.zeros((1, f_out), jnp.float32).at[0, :dim_out].set(b2)
    # TODO(synk): for very large graphs (resident x > ~1/4 of VMEM) switch x
    # back to a per-block (tk, f_in) BlockSpec instead of fully resident.

    out_itemsize = np.dtype(out_dtype).itemsize
    nnz_blocks = int(np.asarray(nblk).sum())
    flops = (2 * nnz_blocks * tm * tk * f_in
             + 2 * n_pad * (f_in * f_hid + f_hid * f_out))
    bytes_accessed = (nnz_blocks * tm * tk                       # int8 A blocks
                      + n_pad * f_in * 2                         # resident x
                      + (f_in * f_hid + f_hid * f_out) * 2
                      + (f_hid + f_out) * 4
                      + n_pad * f_out * out_itemsize
                      + blk_k.size * 4 + nblk.size * 4)

    budget = (3 * tm * tk                              # A tile, triple-buffered
              + n_pad * f_in * 2                       # resident x
              + (f_in * f_hid + f_hid * f_out) * 2 + (f_hid + f_out) * 4
              + 2 * tm * f_out * out_itemsize          # out double buffer
              + tm * f_in * 4                          # f32 accumulator scratch
              + 4 * tm * max(f_in, f_hid, f_out) * 4)  # epilogue temporaries
    vmem_limit = int(min(max(32 * 1024 * 1024, int(budget * 1.5)),
                         (vmem_cap * 3) // 4))

    kernel = _make_kernel(tm, tk, nb_max, float(eps), compute_dtype)

    def call(use_buffered):
        def spec(shape, index_map, count):
            if use_buffered:
                return pl.BlockSpec(shape, index_map,
                                    pipeline_mode=pl.Buffered(count))
            return pl.BlockSpec(shape, index_map)

        def const(shape):   # constant-index operands: single buffer is enough
            return spec(shape, lambda i, j, bk, nb: (0, 0), 1)

        in_specs = [
            spec((tm, tk), lambda i, j, bk, nb: (i, bk[i * nb_max + j]), 3),
            const((n_pad, f_in)),     # x (VMEM-resident)
            const((f_in, f_hid)),     # W1
            const((1, f_hid)),        # b1
            const((f_hid, f_out)),    # W2
            const((1, f_out)),        # b2
        ]
        out_spec = pl.BlockSpec((tm, f_out), lambda i, j, bk, nb: (i, 0))

        return pl.pallas_call(
            kernel,
            out_shape=jax.ShapeDtypeStruct((n_pad, f_out), out_dtype),
            grid_spec=pltpu.PrefetchScalarGridSpec(
                num_scalar_prefetch=2,
                grid=(n_i, nb_max),
                in_specs=in_specs,
                out_specs=out_spec,
                scratch_shapes=[pltpu.VMEM((tm, f_in), jnp.float32)],
            ),
            compiler_params=pltpu.CompilerParams(
                dimension_semantics=("parallel", "arbitrary"),
                vmem_limit_bytes=vmem_limit,
            ),
            cost_estimate=pl.CostEstimate(
                flops=int(flops), transcendentals=int(n_pad),
                bytes_accessed=int(bytes_accessed)),
        )(blk_k, nblk, adj, xp, w1p, b1p, w2p, b2p)

    try:
        out_pad = call(True)
    except Exception:
        # Pallas build without BlockSpec.pipeline_mode support: fall back to
        # default double buffering (identical semantics, slightly more VMEM).
        out_pad = call(False)

    return out_pad[:n, :dim_out]


def general_layer_ref(x, edge_index, w1, b1, w2, b2, eps=0.0):
    """Pure-JAX f32 reference (GINConv -> ReLU -> L2 normalize)."""
    src, dst = edge_index[0], edge_index[1]
    agg = jnp.zeros_like(x).at[dst].add(x[src])
    h = (1.0 + eps) * x + agg
    h1 = jnp.maximum(h @ w1 + b1, 0.0)
    y = jnp.maximum(h1 @ w2 + b2, 0.0)
    norm = jnp.sqrt(jnp.sum(y * y, axis=1, keepdims=True))
    return y / jnp.maximum(norm, 1e-12)


if __name__ == "__main__":
    key = jax.random.PRNGKey(0)
    k_x, k_e, k_w1, k_b1, k_w2, k_b2 = jax.random.split(key, 6)

    N, E = 16, 48
    dim_in, dim_out = 32, 32

    x = jax.random.normal(k_x, (N, dim_in), dtype=jnp.float32)
    edge_index = jax.random.randint(k_e, (2, E), 0, N, dtype=jnp.int32)

    # Deterministic Linear init (uniform +-1/sqrt(fan_in), like nn.Linear).
    lim1 = 1.0 / (dim_in ** 0.5)
    lim2 = 1.0 / (dim_out ** 0.5)
    w1 = jax.random.uniform(k_w1, (dim_in, dim_out), jnp.float32, -lim1, lim1)
    b1 = jax.random.uniform(k_b1, (dim_out,), jnp.float32, -lim1, lim1)
    w2 = jax.random.uniform(k_w2, (dim_out, dim_out), jnp.float32, -lim2, lim2)
    b2 = jax.random.uniform(k_b2, (dim_out,), jnp.float32, -lim2, lim2)

    out = general_layer(x, edge_index, w1, b1, w2, b2, eps=0.0)
    out = jax.block_until_ready(out)

    ref = general_layer_ref(x, edge_index, w1, b1, w2, b2, eps=0.0)
    assert out.shape == (N, dim_out)
    # bf16 matmul operands / bf16 output -> compare against the f32 reference
    # at bf16-level tolerance (outputs are L2-normalized, so errors are small).
    assert jnp.allclose(out.astype(jnp.float32), ref, atol=2e-2, rtol=2e-2), \
        "mismatch vs reference"

    print("KERNEL_OK")
</pallas_src>

<mosaic_0001>
module attributes {stable_mosaic.version = 11 : i64} {
  func.func @kernel(%arg0: i32, %arg1: i32, %arg2: memref<2xi32, #tpu.memory_space<smem>>, %arg3: memref<2xi32, #tpu.memory_space<smem>>, %arg4: memref<64x128xi8, #tpu.memory_space<vmem>>, %arg5: memref<128x128xbf16, #tpu.memory_space<vmem>>, %arg6: memref<128x128xbf16, #tpu.memory_space<vmem>>, %arg7: memref<1x128xf32, #tpu.memory_space<vmem>>, %arg8: memref<128x128xbf16, #tpu.memory_space<vmem>>, %arg9: memref<1x128xf32, #tpu.memory_space<vmem>>, %arg10: memref<64x128xbf16, #tpu.memory_space<vmem>>, %arg11: memref<64x128xf32, #tpu.memory_space<vmem>>) attributes {dimension_semantics = [#tpu.dimension_semantics<parallel>, #tpu.dimension_semantics<arbitrary>], iteration_bounds = array<i64: 2, 1>, scalar_prefetch = 2 : i64, scratch_operands = 1 : i64, tpu.core_type = #tpu.core_type<tc>, window_params = [{transform_indices = @transform_0, window_bounds = array<i64: 64, 128>}, {pipeline_mode = #tpu.pipeline_mode<synchronous>, transform_indices = @transform_1, window_bounds = array<i64: 128, 128>}, {pipeline_mode = #tpu.pipeline_mode<synchronous>, transform_indices = @transform_2, window_bounds = array<i64: 128, 128>}, {pipeline_mode = #tpu.pipeline_mode<synchronous>, transform_indices = @transform_3, window_bounds = array<i64: 1, 128>}, {pipeline_mode = #tpu.pipeline_mode<synchronous>, transform_indices = @transform_4, window_bounds = array<i64: 128, 128>}, {pipeline_mode = #tpu.pipeline_mode<synchronous>, transform_indices = @transform_5, window_bounds = array<i64: 1, 128>}, {transform_indices = @transform_6, window_bounds = array<i64: 64, 128>}]} {
    %c0_i32 = arith.constant 0 : i32
    %0 = arith.cmpi eq, %arg1, %c0_i32 : i32
    %1 = arith.extui %0 : i1 to i32
    %c0_i32_0 = arith.constant 0 : i32
    %2 = arith.cmpi ne, %1, %c0_i32_0 : i32
    scf.if %2 {
      %c64_i32 = arith.constant 64 : i32
      %11 = arith.muli %arg0, %c64_i32 : i32
      %12 = tpu.assume_multiple %11, 64 : i32
      %13 = arith.index_cast %12 : i32 to index
      %c0 = arith.constant 0 : index
      %14 = vector.load %arg5[%13, %c0] : memref<128x128xbf16, #tpu.memory_space<vmem>>, vector<64x128xbf16>
      %15 = arith.extf %14 : vector<64x128xbf16> to vector<64x128xf32>
      %cst = arith.constant 1.000000e+00 : f32
      %16 = vector.broadcast %cst : f32 to vector<64x128xf32>
      %17 = arith.mulf %16, %15 : vector<64x128xf32>
      %c0_4 = arith.constant 0 : index
      %c0_5 = arith.constant 0 : index
      %18 = vector.load %arg11[%c0_4, %c0_5] : memref<64x128xf32, #tpu.memory_space<vmem>>, vector<64x128xf32>
      tpu.vector_store %arg11[%c0_4, %c0_5], %17 {strides = array<i32>} : memref<64x128xf32, #tpu.memory_space<vmem>>, vector<64x128xf32>,
    } else {
    }
    %3 = arith.index_cast %arg0 : i32 to index
    %4 = memref.load %arg3[%3] : memref<2xi32, #tpu.memory_space<smem>>
    %5 = arith.cmpi slt, %arg1, %4 : i32
    %6 = arith.extui %5 : i1 to i32
    %c0_i32_1 = arith.constant 0 : i32
    %7 = arith.cmpi ne, %6, %c0_i32_1 : i32
    scf.if %7 {
      %c1_i32 = arith.constant 1 : i32
      %11 = arith.muli %arg0, %c1_i32 : i32
      %12 = arith.addi %11, %arg1 : i32
      %13 = arith.index_cast %12 : i32 to index
      %14 = memref.load %arg2[%13] : memref<2xi32, #tpu.memory_space<smem>>
      %c128_i32 = arith.constant 128 : i32
      %15 = arith.muli %14, %c128_i32 : i32
      %16 = tpu.assume_multiple %15, 128 : i32
      %c0 = arith.constant 0 : index
      %c0_4 = arith.constant 0 : index
      %17 = vector.load %arg4[%c0, %c0_4] : memref<64x128xi8, #tpu.memory_space<vmem>>, vector<64x128xi8>
      %18 = arith.sitofp %17 : vector<64x128xi8> to vector<64x128xf32>
      %19 = arith.truncf %18 : vector<64x128xf32> to vector<64x128xbf16>
      %c0_5 = arith.constant 0 : index
      %c0_6 = arith.constant 0 : index
      %20 = vector.load %arg11[%c0_5, %c0_6] : memref<64x128xf32, #tpu.memory_space<vmem>>, vector<64x128xf32>
      %21 = arith.index_cast %16 : i32 to index
      %c0_7 = arith.constant 0 : index
      %22 = vector.load %arg5[%21, %c0_7] : memref<128x128xbf16, #tpu.memory_space<vmem>>, vector<128x128xbf16>
      %cst = arith.constant dense<0.000000e+00> : vector<64x128xf32>
      %23 = tpu.matmul %19, %22, %cst {dimension_numbers = #tpu.dot_dimension_numbers<[1], [0], [0], [1], [0, 0, 1, 1], [], []>} : vector<64x128xbf16>, vector<128x128xbf16>, vector<64x128xf32> -> vector<64x128xf32>
      %24 = arith.addf %20, %23 : vector<64x128xf32>
      %c0_8 = arith.constant 0 : index
      %c0_9 = arith.constant 0 : index
      %25 = vector.load %arg11[%c0_8, %c0_9] : memref<64x128xf32, #tpu.memory_space<vmem>>, vector<64x128xf32>
      tpu.vector_store %arg11[%c0_8, %c0_9], %24 {strides = array<i32>} : memref<64x128xf32, #tpu.memory_space<vmem>>, vector<64x128xf32>,
    } else {
    }
    %c0_i32_2 = arith.constant 0 : i32
    %8 = arith.cmpi eq, %arg1, %c0_i32_2 : i32
    %9 = arith.extui %8 : i1 to i32
    %c0_i32_3 = arith.constant 0 : i32
    %10 = arith.cmpi ne, %9, %c0_i32_3 : i32
    scf.if %10 {
      %c0 = arith.constant 0 : index
      %c0_4 = arith.constant 0 : index
      %11 = vector.load %arg11[%c0, %c0_4] : memref<64x128xf32, #tpu.memory_space<vmem>>, vector<64x128xf32>
      %12 = arith.truncf %11 : vector<64x128xf32> to vector<64x128xbf16>
      %c0_5 = arith.constant 0 : index
      %c0_6 = arith.constant 0 : index
      %13 = vector.load %arg6[%c0_5, %c0_6] : memref<128x128xbf16, #tpu.memory_space<vmem>>, vector<128x128xbf16>
      %cst = arith.constant dense<0.000000e+00> : vector<64x128xf32>
      %14 = tpu.matmul %12, %13, %cst {dimension_numbers = #tpu.dot_dimension_numbers<[1], [0], [0], [1], [0, 0, 1, 1], [], []>} : vector<64x128xbf16>, vector<128x128xbf16>, vector<64x128xf32> -> vector<64x128xf32>
      %c0_7 = arith.constant 0 : index
      %c0_8 = arith.constant 0 : index
      %15 = vector.load %arg7[%c0_7, %c0_8] : memref<1x128xf32, #tpu.memory_space<vmem>>, vector<1x128xf32>
      %16 = vector.broadcast %15 : vector<1x128xf32> to vector<64x128xf32>
      %17 = arith.addf %14, %16 : vector<64x128xf32>
      %cst_9 = arith.constant 0.000000e+00 : f32
      %18 = vector.broadcast %cst_9 : f32 to vector<64x128xf32>
      %19 = arith.maximumf %17, %18 : vector<64x128xf32>
      %20 = arith.truncf %19 : vector<64x128xf32> to vector<64x128xbf16>
      %c0_10 = arith.constant 0 : index
      %c0_11 = arith.constant 0 : index
      %21 = vector.load %arg8[%c0_10, %c0_11] : memref<128x128xbf16, #tpu.memory_space<vmem>>, vector<128x128xbf16>
      %cst_12 = arith.constant dense<0.000000e+00> : vector<64x128xf32>
      %22 = tpu.matmul %20, %21, %cst_12 {dimension_numbers = #tpu.dot_dimension_numbers<[1], [0], [0], [1], [0, 0, 1, 1], [], []>} : vector<64x128xbf16>, vector<128x128xbf16>, vector<64x128xf32> -> vector<64x128xf32>
      %c0_13 = arith.constant 0 : index
      %c0_14 = arith.constant 0 : index
      %23 = vector.load %arg9[%c0_13, %c0_14] : memref<1x128xf32, #tpu.memory_space<vmem>>, vector<1x128xf32>
      %24 = vector.broadcast %23 : vector<1x128xf32> to vector<64x128xf32>
      %25 = arith.addf %22, %24 : vector<64x128xf32>
      %cst_15 = arith.constant 0.000000e+00 : f32
      %26 = vector.broadcast %cst_15 : f32 to vector<64x128xf32>
      %27 = arith.maximumf %25, %26 : vector<64x128xf32>
      %28 = arith.mulf %27, %27 : vector<64x128xf32>
      %cst_16 = arith.constant dense<0.000000e+00> : vector<64xf32>
      %29 = vector.multi_reduction <add>, %28, %cst_16 [1] : vector<64x128xf32> to vector<64xf32>
      %30 = vector.shape_cast %29 : vector<64xf32> to vector<64x1xf32>
      %cst_17 = arith.constant 1.000000e-24 : f32
      %31 = vector.broadcast %cst_17 : f32 to vector<64x1xf32>
      %32 = arith.maximumf %30, %31 : vector<64x1xf32>
      %33 = math.rsqrt %32 : vector<64x1xf32>
      %34 = vector.broadcast %33 : vector<64x1xf32> to vector<64x128xf32>
      %35 = arith.mulf %27, %34 : vector<64x128xf32>
      %36 = arith.truncf %35 : vector<64x128xf32> to vector<64x128xbf16>
      %c0_18 = arith.constant 0 : index
      %c0_19 = arith.constant 0 : index
      %37 = vector.load %arg10[%c0_18, %c0_19] : memref<64x128xbf16, #tpu.memory_space<vmem>>, vector<64x128xbf16>
      tpu.vector_store %arg10[%c0_18, %c0_19], %36 {strides = array<i32>} : memref<64x128xbf16, #tpu.memory_space<vmem>>, vector<64x128xbf16>,
    } else {
    }
    return
  }
  func.func @transform_0(%arg0: i32, %arg1: i32, %arg2: memref<2xi32, #tpu.memory_space<smem>>, %arg3: memref<2xi32, #tpu.memory_space<smem>>) -> (i32, i32) {
    %c1_i32 = arith.constant 1 : i32
    %0 = arith.muli %arg0, %c1_i32 : i32
    %1 = arith.addi %0, %arg1 : i32
    %2 = arith.index_cast %1 : i32 to index
    %3 = memref.load %arg2[%2] : memref<2xi32, #tpu.memory_space<smem>>
    %c0_i32 = arith.constant 0 : i32
    return %arg0, %3 : i32, i32
  }
  func.func @transform_1(%arg0: i32, %arg1: i32, %arg2: memref<2xi32, #tpu.memory_space<smem>>, %arg3: memref<2xi32, #tpu.memory_space<smem>>) -> (i32, i32) {
    %c0_i32 = arith.constant 0 : i32
    %c0_i32_0 = arith.constant 0 : i32
    %c0_i32_1 = arith.constant 0 : i32
    return %c0_i32, %c0_i32_0 : i32, i32
  }
  func.func @transform_2(%arg0: i32, %arg1: i32, %arg2: memref<2xi32, #tpu.memory_space<smem>>, %arg3: memref<2xi32, #tpu.memory_space<smem>>) -> (i32, i32) {
    %c0_i32 = arith.constant 0 : i32
    %c0_i32_0 = arith.constant 0 : i32
    %c0_i32_1 = arith.constant 0 : i32
    return %c0_i32, %c0_i32_0 : i32, i32
  }
  func.func @transform_3(%arg0: i32, %arg1: i32, %arg2: memref<2xi32, #tpu.memory_space<smem>>, %arg3: memref<2xi32, #tpu.memory_space<smem>>) -> (i32, i32) {
    %c0_i32 = arith.constant 0 : i32
    %c0_i32_0 = arith.constant 0 : i32
    %c0_i32_1 = arith.constant 0 : i32
    return %c0_i32, %c0_i32_0 : i32, i32
  }
  func.func @transform_4(%arg0: i32, %arg1: i32, %arg2: memref<2xi32, #tpu.memory_space<smem>>, %arg3: memref<2xi32, #tpu.memory_space<smem>>) -> (i32, i32) {
    %c0_i32 = arith.constant 0 : i32
    %c0_i32_0 = arith.constant 0 : i32
    %c0_i32_1 = arith.constant 0 : i32
    return %c0_i32, %c0_i32_0 : i32, i32
  }
  func.func @transform_5(%arg0: i32, %arg1: i32, %arg2: memref<2xi32, #tpu.memory_space<smem>>, %arg3: memref<2xi32, #tpu.memory_space<smem>>) -> (i32, i32) {
    %c0_i32 = arith.constant 0 : i32
    %c0_i32_0 = arith.constant 0 : i32
    %c0_i32_1 = arith.constant 0 : i32
    return %c0_i32, %c0_i32_0 : i32, i32
  }
  func.func @transform_6(%arg0: i32, %arg1: i32, %arg2: memref<2xi32, #tpu.memory_space<smem>>, %arg3: memref<2xi32, #tpu.memory_space<smem>>) -> (i32, i32) {
    %c0_i32 = arith.constant 0 : i32
    %c0_i32_0 = arith.constant 0 : i32
    return %arg0, %c0_i32 : i32, i32
  }
}

</mosaic_0001>

<llo_original>
// kernel: tpu_custom_call.1
$region0: #{tpu_custom_call.1}
  #allocation0 [shape = 'u32[]', space=smem, size = 0x4, offset = 0x4, fixed_abs, tag = 'smem constant byte address 0x4 - core index']
  #allocation1 [shape = 'u32[144,128]{1,0:T(1,128)}', space=vmem, size = 0x12000, scoped, tag = 'internal scratch']
  #allocation2 [shape = 'f32[64,128]{1,0:T(8,128)}', space=vmem, size = 0x8000, scoped, tag = 'scratch operand']
  #allocation3 [shape = 's32[1]{0}', space=sflag, size = 0x4, scoped, tag = 'scoped memory for tpu_custom_call.1']
  #allocation4 [shape = 'u8[512]{0}', space=smem, size = 0x200, scoped, tag = 'prefetched SMEM operand 0']
  #allocation5 [shape = 'u8[512]{0}', space=smem, size = 0x200, scoped, tag = 'prefetched SMEM operand 1']
  %s0 = inlined_call_operand.hbm [shape: s32[2], index: 0, kind: input, shape index: {}]
  %s1 = inlined_call_operand.vmem [shape: s32[2], index: 1, kind: input, shape index: {}]
  %s2 = inlined_call_operand.hbm [shape: s8[128,128], index: 2, kind: input, shape index: {}]
  %s3 = inlined_call_operand.hbm [shape: bf16[128,128], index: 3, kind: input, shape index: {}]
  %s4 = inlined_call_operand.hbm [shape: bf16[128,128], index: 4, kind: input, shape index: {}]
  %s5 = inlined_call_operand.vmem [shape: f32[1,128], index: 5, kind: input, shape index: {}]
  %s6 = inlined_call_operand.hbm [shape: bf16[128,128], index: 6, kind: input, shape index: {}]
  %s7 = inlined_call_operand.vmem [shape: f32[1,128], index: 7, kind: input, shape index: {}]
  %s8 = inlined_call_operand.hbm [shape: bf16[128,128], index: 8, kind: output, shape index: {}]
  %s9 = sld [smem:[#allocation0]]
  $region85: #{tpu_custom_call.1} parent=0
    _
  %s11 = ssub.s32 1, %s9
  %s12 = scalar_select 0, %s11, %s9
  %14 = dma.hbm_to_smem %s0, 16, [#allocation4], [#allocation3]
  %s15 = sshll.u32 %s1, 4
  %s16 = int_to_ptr.vmem [resolvable:$true] %s15
  %18 = dma.vmem_to_smem %s16, 16, [#allocation5], [#allocation3]
  %19 = dma.done [#allocation3], 32
  %20 = sfence
  $region1: #{tpu_custom_call.1} parent=0
    #allocation6 [shape = 'u8[16384]{0}', space=vmem, size = 0x4000, scoped, tag = 'input window, operand 2']
    #allocation7 [shape = 's32[2]{0}', space=sflag, size = 0x8, scoped, tag = 'scoped memory for tpu_custom_call.1']
    #allocation8 [shape = 's32[2]{0}', space=sflag, size = 0x8, scoped, tag = 'scoped memory for tpu_custom_call.1']
    #allocation9 [shape = 'u8[32768]{0}', space=vmem, size = 0x8000, scoped, tag = 'input window, operand 3, single buffered']
    #allocation10 [shape = 's32[1]{0}', space=sflag, size = 0x4, scoped, tag = 'scoped memory for tpu_custom_call.1']
    #allocation11 [shape = 'u8[32768]{0}', space=vmem, size = 0x8000, scoped, tag = 'input window, operand 4, single buffered']
    #allocation12 [shape = 'u8[32768]{0}', space=vmem, size = 0x8000, scoped, tag = 'input window, operand 6, single buffered']
    #allocation13 [shape = 's32[1]{0}', space=sflag, size = 0x4, scoped, tag = 'scoped memory for tpu_custom_call.1']
    #allocation14 [shape = 'u8[32768]{0}', space=vmem, size = 0x8000, scoped, tag = 'output window, operand 0']
    %21 = vsyncpa [#allocation7], 0
    %s22 = scalar_lea.sflag [#allocation7], 1
    %23 = vsyncpa %s22, 0
    %24 = vsyncpa [#allocation10], 0
    %25 = vsyncpa [#allocation13], 0
    %26 = vsyncpa [#allocation8], 0
    %s27 = scalar_lea.sflag [#allocation8], 1
    %28 = vsyncpa %s27, 0
    loop: start=0, step=1, limit=4
    $region2: #{tpu_custom_call.1} parent=1 // loop_pre_header
      _
    $region3: #{tpu_custom_call.1} parent=1 // loop_header
      %s30 = sphi 0, %s34
      %p31 = scmp.ge.s32.totalorder %s30, 4
      %s37 = sphi 0, %s49
      %s38 = sphi 0, %s45
      %s39 = sphi 0, %s37
      %s40 = sphi 0, %s38
      %s41 = sphi 0, %s39
      %s42 = sphi 0, %s40
      %s58 = sphi 0, %s60
      %s61 = sphi 0, %s58
      %s62 = sphi 0, %s61
      %s78 = sphi 0, %s62
      %s82 = sphi 0, %s82
      %s84 = sphi 0, %s82
      %s85 = sphi 0, %s84
      %s99 = sphi 0, %s85
      %s103 = sphi 0, %s103
      %s105 = sphi 0, %s103
      %s106 = sphi 0, %s105
      %s120 = sphi 0, %s106
      %s124 = sphi 0, %s124
      %s126 = sphi 0, %s124
      %s127 = sphi 0, %s126
      %s141 = sphi 0, %s127
      %s145 = sphi 0, %s145
      %s147 = sphi 0, %s145
      %s148 = sphi 0, %s147
      %s162 = sphi 0, %s148
      %s166 = sphi 0, %s166
      %s168 = sphi 0, %s166
      %s169 = sphi 0, %s168
      %s183 = sphi 0, %s169
      %s189 = sphi 0, %s191
      %s192 = sphi 0, %s189
      %s193 = sphi 0, %s192
      %s209 = sphi 0, %s193
    $region4: #{tpu_custom_call.1} parent=1 // loop_header_branch
      %33 = sbr.rel (%p31) target = $region8
    $region5: #{tpu_custom_call.1} parent=1 // loop_body
      %s35 = ssub.s32 %s30, 1
      %s36 = ssub.s32 %s30, 2
      %s43 = sadd.s32 1, %s38
      %p44 = scmp.ge.s32.totalorder %s43, 1
      %s45 = scalar_select %p44, 0, %s43
      %s46 = sadd.s32 1, %s37
      %s47 = scalar_select %p44, %s46, %s37
      %p48 = scmp.ge.s32.totalorder %s47, 2
      %s49 = scalar_select %p48, 0, %s47
      %s50 = sadd.s32 %s37, %s38
      %s51 = sld [smem:[#allocation4 + %s50]]
      %s52 = sadd.s32 %s49, %s45
      %s53 = sld [smem:[#allocation4 + %s52]]
      %s54 = ssub.s32 %s37, %s49
      %s55 = ssub.s32 %s51, %s53
      %s56 = sor.u32 %s54, %s55
      %p57 = scmp.eq.s32.totalorder %s56, 0
      %s59 = sadd.s32 %s58, 1
      %s60 = scalar_select %p57, %s58, %s59
      %p63 = pneg %p57
      %p64 = scmp.eq.s32.totalorder %s30, 1
      %p65 = por %p63, %p64
      %p66 = scmp.ne.s32.totalorder %s58, %s61
      %p67 = scmp.eq.s32.totalorder %s30, 0
      %p68 = por %p66, %p67
      %p69 = scmp.ne.s32.totalorder %s58, %s61
      %p70 = scmp.eq.s32.totalorder %s35, 1
      %p71 = por %p69, %p70
      %p72 = scmp.ne.s32.totalorder %s61, %s62
      %p73 = scmp.eq.s32.totalorder %s35, 0
      %p74 = por %p72, %p73
      %p75 = scmp.ne.s32.totalorder %s61, %s62
      %p76 = scmp.eq.s32.totalorder %s36, 1
      %p77 = por %p75, %p76
      %p79 = scmp.ne.s32.totalorder %s62, %s78
      %p80 = scmp.eq.s32.totalorder %s36, 0
      %p81 = por %p79, %p80
      %s83 = sadd.s32 %s82, 1
      %p86 = scmp.eq.s32.totalorder %s30, 1
      %p87 = scmp.ne.s32.totalorder %s82, %s84
      %p88 = scmp.eq.s32.totalorder %s30, 0
      %p89 = por %p87, %p88
      %p90 = scmp.ne.s32.totalorder %s82, %s84
      %p91 = scmp.eq.s32.totalorder %s35, 1
      %p92 = por %p90, %p91
      %p93 = scmp.ne.s32.totalorder %s84, %s85
      %p94 = scmp.eq.s32.totalorder %s35, 0
      %p95 = por %p93, %p94
      %p96 = scmp.ne.s32.totalorder %s84, %s85
      %p97 = scmp.eq.s32.totalorder %s36, 1
      %p98 = por %p96, %p97
      %p100 = scmp.ne.s32.totalorder %s85, %s99
      %p101 = scmp.eq.s32.totalorder %s36, 0
      %p102 = por %p100, %p101
      %s104 = sadd.s32 %s103, 1
      %p107 = scmp.eq.s32.totalorder %s30, 1
      %p108 = scmp.ne.s32.totalorder %s103, %s105
      %p109 = scmp.eq.s32.totalorder %s30, 0
      %p110 = por %p108, %p109
      %p111 = scmp.ne.s32.totalorder %s103, %s105
      %p112 = scmp.eq.s32.totalorder %s35, 1
      %p113 = por %p111, %p112
      %p114 = scmp.ne.s32.totalorder %s105, %s106
      %p115 = scmp.eq.s32.totalorder %s35, 0
      %p116 = por %p114, %p115
      %p117 = scmp.ne.s32.totalorder %s105, %s106
      %p118 = scmp.eq.s32.totalorder %s36, 1
      %p119 = por %p117, %p118
      %p121 = scmp.ne.s32.totalorder %s106, %s120
      %p122 = scmp.eq.s32.totalorder %s36, 0
      %p123 = por %p121, %p122
      %s125 = sadd.s32 %s124, 1
      %p128 = scmp.eq.s32.totalorder %s30, 1
      %p129 = scmp.ne.s32.totalorder %s124, %s126
      %p130 = scmp.eq.s32.totalorder %s30, 0
      %p131 = por %p129, %p130
      %p132 = scmp.ne.s32.totalorder %s124, %s126
      %p133 = scmp.eq.s32.totalorder %s35, 1
      %p134 = por %p132, %p133
      %p135 = scmp.ne.s32.totalorder %s126, %s127
      %p136 = scmp.eq.s32.totalorder %s35, 0
      %p137 = por %p135, %p136
      %p138 = scmp.ne.s32.totalorder %s126, %s127
      %p139 = scmp.eq.s32.totalorder %s36, 1
      %p140 = por %p138, %p139
      %p142 = scmp.ne.s32.totalorder %s127, %s141
      %p143 = scmp.eq.s32.totalorder %s36, 0
      %p144 = por %p142, %p143
      %s146 = sadd.s32 %s145, 1
      %p149 = scmp.eq.s32.totalorder %s30, 1
      %p150 = scmp.ne.s32.totalorder %s145, %s147
      %p151 = scmp.eq.s32.totalorder %s30, 0
      %p152 = por %p150, %p151
      %p153 = scmp.ne.s32.totalorder %s145, %s147
      %p154 = scmp.eq.s32.totalorder %s35, 1
      %p155 = por %p153, %p154
      %p156 = scmp.ne.s32.totalorder %s147, %s148
      %p157 = scmp.eq.s32.totalorder %s35, 0
      %p158 = por %p156, %p157
      %p159 = scmp.ne.s32.totalorder %s147, %s148
      %p160 = scmp.eq.s32.totalorder %s36, 1
      %p161 = por %p159, %p160
      %p163 = scmp.ne.s32.totalorder %s148, %s162
      %p164 = scmp.eq.s32.totalorder %s36, 0
      %p165 = por %p163, %p164
      %s167 = sadd.s32 %s166, 1
      %p170 = scmp.eq.s32.totalorder %s30, 1
      %p171 = scmp.ne.s32.totalorder %s166, %s168
      %p172 = scmp.eq.s32.totalorder %s30, 0
      %p173 = por %p171, %p172
      %p174 = scmp.ne.s32.totalorder %s166, %s168
      %p175 = scmp.eq.s32.totalorder %s35, 1
      %p176 = por %p174, %p175
      %p177 = scmp.ne.s32.totalorder %s168, %s169
      %p178 = scmp.eq.s32.totalorder %s35, 0
      %p179 = por %p177, %p178
      %p180 = scmp.ne.s32.totalorder %s168, %s169
      %p181 = scmp.eq.s32.totalorder %s36, 1
      %p182 = por %p180, %p181
      %p184 = scmp.ne.s32.totalorder %s169, %s183
      %p185 = scmp.eq.s32.totalorder %s36, 0
      %p186 = por %p184, %p185
      %s187 = ssub.s32 %s37, %s49
      %p188 = scmp.eq.s32.totalorder %s187, 0
      %s190 = sadd.s32 %s189, 1
      %s191 = scalar_select %p188, %s189, %s190
      %p194 = pneg %p188
      %p195 = scmp.eq.s32.totalorder %s30, 1
      %p196 = por %p194, %p195
      %p197 = scmp.ne.s32.totalorder %s189, %s192
      %p198 = scmp.eq.s32.totalorder %s30, 0
      %p199 = por %p197, %p198
      %p200 = scmp.ne.s32.totalorder %s189, %s192
      %p201 = scmp.eq.s32.totalorder %s35, 1
      %p202 = por %p200, %p201
      %p203 = scmp.ne.s32.totalorder %s192, %s193
      %p204 = scmp.eq.s32.totalorder %s35, 0
      %p205 = por %p203, %p204
      %p206 = scmp.ne.s32.totalorder %s192, %s193
      %p207 = scmp.eq.s32.totalorder %s36, 1
      %p208 = por %p206, %p207
      %p210 = scmp.ne.s32.totalorder %s193, %s209
      %p211 = scmp.eq.s32.totalorder %s36, 0
      %p212 = por %p210, %p211
      %p213 = scmp.le.s32.totalorder 1, %s30
      %p214 = scmp.lt.s32.totalorder %s30, 3
      %p215 = pnand %p213, %p214
      %p216 = pneg %p215
      // Predicated region
      $region9: #{tpu_custom_call.1} parent=5 // pred_check
        _
      $region10: #{tpu_custom_call.1} parent=5 // pred_check_branch
        %218 = sbr.rel (%p215) target = $region12
      $region11: #{tpu_custom_call.1} parent=5 // pred_region
        %s219 = ssub.s32 %s30, 1
        // Predicated region
        $region13: #{tpu_custom_call.1} parent=11 // pred_check
          %p220 = pneg %p95
        $region14: #{tpu_custom_call.1} parent=11 // pred_check_branch
          %222 = sbr.rel (%p220) target = $region16
        $region15: #{tpu_custom_call.1} parent=11 // pred_region
          %s224 = ssub.s32 1024, 1024
          %225 = vsyncadd [#allocation10], %s224
          %s226 = sshll.u32 [#allocation9], 4
          %s227 = int_to_ptr.vmem [resolvable:$true] %s226
          %232 = dma.hbm_to_vmem [thread:$0]  %s3, 1024, %s227, [#allocation10], 64, 64, 4
        $region16: #{tpu_custom_call.1} parent=11 // pred_fallthru
          _
        // Predicated region
        $region17: #{tpu_custom_call.1} parent=11 // pred_check
          %p233 = pneg %p116
        $region18: #{tpu_custom_call.1} parent=11 // pred_check_branch
          %235 = sbr.rel (%p233) target = $region20
        $region19: #{tpu_custom_call.1} parent=11 // pred_region
          %s237 = ssub.s32 1024, 1024
          %238 = vsyncadd [#allocation10], %s237
          %s239 = sshll.u32 [#allocation11], 4
          %s240 = int_to_ptr.vmem [resolvable:$true] %s239
          %245 = dma.hbm_to_vmem [thread:$0]  %s4, 1024, %s240, [#allocation10], 64, 64, 4
        $region20: #{tpu_custom_call.1} parent=11 // pred_fallthru
          _
        // Predicated region
        $region21: #{tpu_custom_call.1} parent=11 // pred_check
          %p246 = pneg %p137
        $region22: #{tpu_custom_call.1} parent=11 // pred_check_branch
          %248 = sbr.rel (%p246) target = $region24
        $region23: #{tpu_custom_call.1} parent=11 // pred_region
          _
        $region24: #{tpu_custom_call.1} parent=11 // pred_fallthru
          _
        // Predicated region
        $region25: #{tpu_custom_call.1} parent=11 // pred_check
          %p249 = pneg %p158
        $region26: #{tpu_custom_call.1} parent=11 // pred_check_branch
          %251 = sbr.rel (%p249) target = $region28
        $region27: #{tpu_custom_call.1} parent=11 // pred_region
          %s253 = ssub.s32 1024, 1024
          %254 = vsyncadd [#allocation13], %s253
          %s255 = sshll.u32 [#allocation12], 4
          %s256 = int_to_ptr.vmem [resolvable:$true] %s255
          %261 = dma.hbm_to_vmem [thread:$0]  %s6, 1024, %s256, [#allocation13], 64, 64, 4
        $region28: #{tpu_custom_call.1} parent=11 // pred_fallthru
          _
        // Predicated region
        $region29: #{tpu_custom_call.1} parent=11 // pred_check
          %p262 = pneg %p179
        $region30: #{tpu_custom_call.1} parent=11 // pred_check_branch
          %264 = sbr.rel (%p262) target = $region32
        $region31: #{tpu_custom_call.1} parent=11 // pred_region
          _
        $region32: #{tpu_custom_call.1} parent=11 // pred_fallthru
          _
      $region12: #{tpu_custom_call.1} parent=5 // pred_fallthru
        _
      %p265 = scmp.lt.s32.totalorder %s30, 2
      // Predicated region
      $region33: #{tpu_custom_call.1} parent=5 // pred_check
        %p266 = pneg %p265
      $region34: #{tpu_custom_call.1} parent=5 // pred_check_branch
        %268 = sbr.rel (%p266) target = $region36
      $region35: #{tpu_custom_call.1} parent=5 // pred_region
        // Predicated region
        $region37: #{tpu_custom_call.1} parent=35 // pred_check
          %p269 = pneg %p68
        $region38: #{tpu_custom_call.1} parent=35 // pred_check_branch
          %271 = sbr.rel (%p269) target = $region40
        $region39: #{tpu_custom_call.1} parent=35 // pred_region
          %s272 = sand.u32 %s58, 1
          %s273 = scalar_lea.sflag [#allocation7], %s272
          %s274 = sand.u32 %s58, 1
          %s275 = smul.addr %s274, 16
          %s276 = scalar_lea.vmem [#allocation6], %s275
          %s277 = sadd.s32 %s37, %s38
          %s278 = sld [smem:[#allocation4 + %s277]]
          %s279 = smul.u32 2, %s37
          %s281 = ssub.s32 256, 256
          %282 = vsyncadd %s273, %s281
          %s283 = sadd.s32 %s278, %s279
          %s284 = smul.addr %s283, 128
          %s285 = scalar_lea.hbm %s2, %s284
          %s286 = sshll.u32 %s276, 4
          %s287 = int_to_ptr.vmem [resolvable:$true] %s286
          %292 = dma.hbm_to_vmem [thread:$0]  %s285, 256, %s287, %s273, 128, 128, 8
        $region40: #{tpu_custom_call.1} parent=35 // pred_fallthru
          _
      $region36: #{tpu_custom_call.1} parent=5 // pred_fallthru
        _
      %p293 = scmp.le.s32.totalorder 1, %s30
      %p294 = scmp.lt.s32.totalorder %s30, 3
      %p295 = pnand %p293, %p294
      %p296 = pneg %p295
      // Predicated region
      $region41: #{tpu_custom_call.1} parent=5 // pred_check
        _
      $region42: #{tpu_custom_call.1} parent=5 // pred_check_branch
        %298 = sbr.rel (%p295) target = $region44
      $region43: #{tpu_custom_call.1} parent=5 // pred_region
        %s299 = ssub.s32 %s30, 1
        %s300 = sand.u32 %s61, 1
        %s301 = scalar_lea.sflag [#allocation7], %s300
        %s302 = sand.u32 %s61, 1
        %s303 = smul.addr %s302, 16
        %s304 = scalar_lea.vmem [#allocation6], %s303
        // Predicated region
        $region45: #{tpu_custom_call.1} parent=43 // pred_check
          %p305 = pneg %p74
        $region46: #{tpu_custom_call.1} parent=43 // pred_check_branch
          %307 = sbr.rel (%p305) target = $region48
        $region47: #{tpu_custom_call.1} parent=43 // pred_region
          %308 = dma.done %s301, 256
        $region48: #{tpu_custom_call.1} parent=43 // pred_fallthru
          _
        // Predicated region
        $region49: #{tpu_custom_call.1} parent=43 // pred_check
          %p309 = pneg %p95
        $region50: #{tpu_custom_call.1} parent=43 // pred_check_branch
          %311 = sbr.rel (%p309) target = $region52
        $region51: #{tpu_custom_call.1} parent=43 // pred_region
          %312 = dma.done [#allocation10], 1024
        $region52: #{tpu_custom_call.1} parent=43 // pred_fallthru
          _
        // Predicated region
        $region53: #{tpu_custom_call.1} parent=43 // pred_check
          %p313 = pneg %p116
        $region54: #{tpu_custom_call.1} parent=43 // pred_check_branch
          %315 = sbr.rel (%p313) target = $region56
        $region55: #{tpu_custom_call.1} parent=43 // pred_region
          %316 = dma.done [#allocation10], 1024
        $region56: #{tpu_custom_call.1} parent=43 // pred_fallthru
          _
        // Predicated region
        $region57: #{tpu_custom_call.1} parent=43 // pred_check
          %p317 = pneg %p158
        $region58: #{tpu_custom_call.1} parent=43 // pred_check_branch
          %319 = sbr.rel (%p317) target = $region60
        $region59: #{tpu_custom_call.1} parent=43 // pred_region
          %320 = dma.done [#allocation13], 1024
        $region60: #{tpu_custom_call.1} parent=43 // pred_fallthru
          _
        %s321 = sand.u32 %s61, 1
        %s322 = scalar_lea.sflag [#allocation7], %s321
        %s323 = sand.u32 %s61, 1
        %s324 = smul.addr %s323, 16
        %s325 = scalar_lea.vmem [#allocation6], %s324
        %p326 = pneg %p74
        %p327 = pneg %p71
        %p328 = pneg %p95
        %p329 = pneg %p92
        %p330 = pneg %p116
        %p331 = pneg %p113
        %p332 = pneg %p137
        %p333 = pneg %p134
        %p334 = pneg %p158
        %p335 = pneg %p155
        %p336 = pneg %p179
        %p337 = pneg %p176
        %p338 = pneg %p205
        %p339 = pneg %p202
        %s340 = sand.u32 %s192, 1
        %s341 = scalar_lea.sflag [#allocation8], %s340
        %s342 = sand.u32 %s192, 1
        %s343 = smul.addr %s342, 32
        %s344 = scalar_lea.vmem [#allocation14], %s343
        %s345 = sadd.s32 %s39, %s40
        %s346 = sld [smem:[#allocation4 + %s345]]
        %s347 = smul.u32 2, %s39
        %s348 = smul.u32 8, %s39
        %p350 = scmp.eq.s32.totalorder %s40, 0
        // Predicated region
        $region61: #{tpu_custom_call.1} parent=43 // pred_check
          %p351 = pneg %p350
        $region62: #{tpu_custom_call.1} parent=43 // pred_check_branch
          %353 = sbr.rel (%p351) target = $region64
        $region63: #{tpu_custom_call.1} parent=43 // pred_region
          %s354 = smul.u32 %s39, 64
          %s355 = sshra.s32 %s354, 3
          %s356 = sand.u32 %s354, 7
          %s357 = smul.addr %s355, 4
          %s358 = scalar_lea.vmem [#allocation9], %s357
          %v359 = vld [vmem:[%s358] sm:$0xf]
          %v360 = vld [vmem:[%s358 + $0x4] sm:$0xf]
          %v361 = vld [vmem:[%s358 + $0x8] sm:$0xf]
          %v362 = vld [vmem:[%s358 + $0xc] sm:$0xf]
          %v363 = vld [vmem:[%s358 + $0x10] sm:$0xf]
          %v364 = vld [vmem:[%s358 + $0x14] sm:$0xf]
          %v365 = vld [vmem:[%s358 + $0x18] sm:$0xf]
          %v366 = vld [vmem:[%s358 + $0x1c] sm:$0xf]
          %v367 = vunpack.c.l.bf16 %v359
          %v368 = vunpack.c.l.bf16 %v360
          %v369 = vunpack.c.l.bf16 %v361
          %v370 = vunpack.c.l.bf16 %v362
          %v371 = vunpack.c.l.bf16 %v363
          %v372 = vunpack.c.l.bf16 %v364
          %v373 = vunpack.c.l.bf16 %v365
          %v374 = vunpack.c.l.bf16 %v366
          %375 = vst [vmem:[#allocation2] sm:$0xff] %v367
          %376 = vst [vmem:[#allocation2 + $0x8] sm:$0xff] %v368
          %377 = vst [vmem:[#allocation2 + $0x10] sm:$0xff] %v369
          %378 = vst [vmem:[#allocation2 + $0x18] sm:$0xff] %v370
          %379 = vst [vmem:[#allocation2 + $0x20] sm:$0xff] %v371
          %380 = vst [vmem:[#allocation2 + $0x28] sm:$0xff] %v372
          %381 = vst [vmem:[#allocation2 + $0x30] sm:$0xff] %v373
          %382 = vst [vmem:[#allocation2 + $0x38] sm:$0xff] %v374
        $region64: #{tpu_custom_call.1} parent=43 // pred_fallthru
          _
        %s383 = sld [smem:[#allocation5 + %s39]]
        %p384 = scmp.lt.s32.totalorder %s40, %s383
        // Predicated region
        $region65: #{tpu_custom_call.1} parent=43 // pred_check
          %p385 = pneg %p384
        $region66: #{tpu_custom_call.1} parent=43 // pred_check_branch
          %387 = sbr.rel (%p385) target = $region68
        $region67: #{tpu_custom_call.1} parent=43 // pred_region
          %s388 = sadd.s32 %s39, %s40
          %s389 = sld [smem:[#allocation4 + %s388]]
          %s390 = smul.u32 %s389, 128
          %v391 = vld [vmem:[%s304] sm:$0xff]
          %v392 = vld [vmem:[%s304 + $0x8] sm:$0xff]
          %v393 = vunpack.c.l.s8.bf16 %v391
          %v394 = vunpack.c.h.s8.bf16 %v391
          %v395 = vunpack.c.l.s8.bf16 %v392
          %v396 = vunpack.c.h.s8.bf16 %v392
          %v397 = vld [vmem:[#allocation2] sm:$0xff]
          %v398 = vld [vmem:[#allocation2 + $0x8] sm:$0xff]
          %v399 = vld [vmem:[#allocation2 + $0x10] sm:$0xff]
          %v400 = vld [vmem:[#allocation2 + $0x18] sm:$0xff]
          %v401 = vld [vmem:[#allocation2 + $0x20] sm:$0xff]
          %v402 = vld [vmem:[#allocation2 + $0x28] sm:$0xff]
          %v403 = vld [vmem:[#allocation2 + $0x30] sm:$0xff]
          %v404 = vld [vmem:[#allocation2 + $0x38] sm:$0xff]
          %s405 = sshra.s32 %s390, 3
          %s406 = sand.u32 %s390, 7
          %s407 = smul.addr %s405, 4
          %s408 = scalar_lea.vmem [#allocation9], %s407
          %v409 = vld [vmem:[%s408] sm:$0xf]
          %v410 = vld [vmem:[%s408 + $0x4] sm:$0xf]
          %v411 = vld [vmem:[%s408 + $0x8] sm:$0xf]
          %v412 = vld [vmem:[%s408 + $0xc] sm:$0xf]
          %v413 = vld [vmem:[%s408 + $0x10] sm:$0xf]
          %v414 = vld [vmem:[%s408 + $0x14] sm:$0xf]
          %v415 = vld [vmem:[%s408 + $0x18] sm:$0xf]
          %v416 = vld [vmem:[%s408 + $0x1c] sm:$0xf]
          %v417 = vld [vmem:[%s408 + $0x20] sm:$0xf]
          %v418 = vld [vmem:[%s408 + $0x24] sm:$0xf]
          %v419 = vld [vmem:[%s408 + $0x28] sm:$0xf]
          %v420 = vld [vmem:[%s408 + $0x2c] sm:$0xf]
          %v421 = vld [vmem:[%s408 + $0x30] sm:$0xf]
          %v422 = vld [vmem:[%s408 + $0x34] sm:$0xf]
          %v423 = vld [vmem:[%s408 + $0x38] sm:$0xf]
          %v424 = vld [vmem:[%s408 + $0x3c] sm:$0xf]
          %v441 = vunpack.c.l.b16 %v409
          %v442 = vunpack.c.l.b16 %v410
          %v443 = vunpack.c.l.b16 %v411
          %v444 = vunpack.c.l.b16 %v412
          %v445 = vunpack.c.l.b16 %v413
          %v446 = vunpack.c.l.b16 %v414
          %v447 = vunpack.c.l.b16 %v415
          %v448 = vunpack.c.l.b16 %v416
          %v449 = vunpack.c.l.b16 %v417
          %v450 = vunpack.c.l.b16 %v418
          %v451 = vunpack.c.l.b16 %v419
          %v452 = vunpack.c.l.b16 %v420
          %v453 = vunpack.c.l.b16 %v421
          %v454 = vunpack.c.l.b16 %v422
          %v455 = vunpack.c.l.b16 %v423
          %v456 = vunpack.c.l.b16 %v424
          %v457 = vpack.c.b16 %v442, %v441
          %v458 = vpack.c.b16 %v444, %v443
          %v459 = vpack.c.b16 %v446, %v445
          %v460 = vpack.c.b16 %v448, %v447
          %v461 = vpack.c.b16 %v450, %v449
          %v462 = vpack.c.b16 %v452, %v451
          %v463 = vpack.c.b16 %v454, %v453
          %v464 = vpack.c.b16 %v456, %v455
          %473 = vmatprep.subr.bf16.mxu0 0
          %474 = vmatpush1.bf16.msra.mxu0 %v457
          %475 = vmatprep.subr.bf16.mxu0 0
          %476 = vmatpush1.bf16.msra.mxu0 %v458
          %477 = vmatprep.subr.bf16.mxu0 0
          %478 = vmatpush1.bf16.msra.mxu0 %v459
          %479 = vmatprep.subr.bf16.mxu0 0
          %480 = vmatpush1.bf16.msra.mxu0 %v460
          %481 = vmatprep.subr.bf16.mxu0 0
          %482 = vmatpush1.bf16.msra.mxu0 %v461
          %483 = vmatprep.subr.bf16.mxu0 0
          %484 = vmatpush1.bf16.msra.mxu0 %v462
          %485 = vmatprep.subr.bf16.mxu0 0
          %486 = vmatpush1.bf16.msra.mxu0 %v463
          %487 = vmatprep.subr.bf16.mxu0 0
          %488 = vmatpush1.bf16.msra.mxu0 %v464
          %489 = vmatprep.subr.bf16.mxu0 0
          %490 = vmatpush1.bf16.msra.mxu0 0
          %491 = vmatprep.subr.bf16.mxu0 0
          %492 = vmatpush1.bf16.msra.mxu0 0
          %493 = vmatprep.subr.bf16.mxu0 0
          %494 = vmatpush1.bf16.msra.mxu0 0
          %495 = vmatprep.subr.bf16.mxu0 0
          %496 = vmatpush1.bf16.msra.mxu0 0
          %497 = vmatprep.subr.bf16.mxu0 0
          %498 = vmatpush1.bf16.msra.mxu0 0
          %499 = vmatprep.subr.bf16.mxu0 0
          %500 = vmatpush1.bf16.msra.mxu0 0
          %501 = vmatprep.subr.bf16.mxu0 0
          %502 = vmatpush1.bf16.msra.mxu0 0
          %503 = vmatprep.subr.bf16.mxu0 0
          %504 = vmatpush1.bf16.msra.mxu0 0
          %505 = vmatprep.mubr.bf16.mxu0 0
          %506 = vmatmul.mubr.bf16.gmra.mrb[0].mxu0 %v393
          %v507 = vpop.f32.mrb[0].mxu0
          %v508 = vadd.f32 0.0, %v507
          %v509 = vpop.f32.mrb[0].mxu0
          %v510 = vpop.f32.mrb[0].mxu0
          %v511 = vadd.f32 0.0, %v510
          %v512 = vpop.f32.mrb[0].mxu0
          %513 = vmatprep.mubr.bf16.mxu0 0
          %514 = vmatmul.mubr.bf16.gmra.mrb[0].mxu0 %v394
          %v515 = vpop.f32.mrb[0].mxu0
          %v516 = vadd.f32 0.0, %v515
          %v517 = vpop.f32.mrb[0].mxu0
          %v518 = vpop.f32.mrb[0].mxu0
          %v519 = vadd.f32 0.0, %v518
          %v520 = vpop.f32.mrb[0].mxu0
          %521 = vmatprep.mubr.bf16.mxu0 0
          %522 = vmatmul.mubr.bf16.gmra.mrb[0].mxu0 %v395
          %v523 = vpop.f32.mrb[0].mxu0
          %v524 = vadd.f32 0.0, %v523
          %v525 = vpop.f32.mrb[0].mxu0
          %v526 = vpop.f32.mrb[0].mxu0
          %v527 = vadd.f32 0.0, %v526
          %v528 = vpop.f32.mrb[0].mxu0
          %529 = vmatprep.mubr.bf16.mxu0 0
          %530 = vmatmul.mubr.bf16.gmra.mrb[0].mxu0 %v396
          %v531 = vpop.f32.mrb[0].mxu0
          %v532 = vadd.f32 0.0, %v531
          %v533 = vpop.f32.mrb[0].mxu0
          %v534 = vpop.f32.mrb[0].mxu0
          %v535 = vadd.f32 0.0, %v534
          %v536 = vpop.f32.mrb[0].mxu0
          %537 = vdwg.mxu0
          %v538 = vadd.f32 %v397, %v508
          %v539 = vadd.f32 %v398, %v511
          %v540 = vadd.f32 %v399, %v516
          %v541 = vadd.f32 %v400, %v519
          %v542 = vadd.f32 %v401, %v524
          %v543 = vadd.f32 %v402, %v527
          %v544 = vadd.f32 %v403, %v532
          %v545 = vadd.f32 %v404, %v535
          %546 = vst [vmem:[#allocation2] sm:$0xff] %v538
          %547 = vst [vmem:[#allocation2 + $0x8] sm:$0xff] %v539
          %548 = vst [vmem:[#allocation2 + $0x10] sm:$0xff] %v540
          %549 = vst [vmem:[#allocation2 + $0x18] sm:$0xff] %v541
          %550 = vst [vmem:[#allocation2 + $0x20] sm:$0xff] %v542
          %551 = vst [vmem:[#allocation2 + $0x28] sm:$0xff] %v543
          %552 = vst [vmem:[#allocation2 + $0x30] sm:$0xff] %v544
          %553 = vst [vmem:[#allocation2 + $0x38] sm:$0xff] %v545
        $region68: #{tpu_custom_call.1} parent=43 // pred_fallthru
          _
        // Predicated region
        $region69: #{tpu_custom_call.1} parent=43 // pred_check
          %p554 = pneg %p350
        $region70: #{tpu_custom_call.1} parent=43 // pred_check_branch
          %556 = sbr.rel (%p554) target = $region72
        $region71: #{tpu_custom_call.1} parent=43 // pred_region
          %v557 = vld [vmem:[#allocation2] sm:$0xff]
          %v558 = vld [vmem:[#allocation2 + $0x8] sm:$0xff]
          %v559 = vld [vmem:[#allocation2 + $0x10] sm:$0xff]
          %v560 = vld [vmem:[#allocation2 + $0x18] sm:$0xff]
          %v561 = vld [vmem:[#allocation2 + $0x20] sm:$0xff]
          %v562 = vld [vmem:[#allocation2 + $0x28] sm:$0xff]
          %v563 = vld [vmem:[#allocation2 + $0x30] sm:$0xff]
          %v564 = vld [vmem:[#allocation2 + $0x38] sm:$0xff]
          %v565 = vpack.c.bf16 %v558, %v557
          %v566 = vpack.c.bf16 %v560, %v559
          %v567 = vpack.c.bf16 %v562, %v561
          %v568 = vpack.c.bf16 %v564, %v563
          %v569 = vld [vmem:[#allocation11] sm:$0xf]
          %v570 = vld [vmem:[#allocation11 + $0x4] sm:$0xf]
          %v571 = vld [vmem:[#allocation11 + $0x8] sm:$0xf]
          %v572 = vld [vmem:[#allocation11 + $0xc] sm:$0xf]
          %v573 = vld [vmem:[#allocation11 + $0x10] sm:$0xf]
          %v574 = vld [vmem:[#allocation11 + $0x14] sm:$0xf]
          %v575 = vld [vmem:[#allocation11 + $0x18] sm:$0xf]
          %v576 = vld [vmem:[#allocation11 + $0x1c] sm:$0xf]
          %v577 = vld [vmem:[#allocation11 + $0x20] sm:$0xf]
          %v578 = vld [vmem:[#allocation11 + $0x24] sm:$0xf]
          %v579 = vld [vmem:[#allocation11 + $0x28] sm:$0xf]
          %v580 = vld [vmem:[#allocation11 + $0x2c] sm:$0xf]
          %v581 = vld [vmem:[#allocation11 + $0x30] sm:$0xf]
          %v582 = vld [vmem:[#allocation11 + $0x34] sm:$0xf]
          %v583 = vld [vmem:[#allocation11 + $0x38] sm:$0xf]
          %v584 = vld [vmem:[#allocation11 + $0x3c] sm:$0xf]
          %v585 = vld [vmem:[%s5] sm:$0x1]
          %v587 = vlaneseq
          %v588 = vshrl.u32 %v587, 7
          %v589 = vsub.s32 0, %v588
          %v590 = vrot.slane %v585, %v589
          %v608 = vunpack.c.l.b16 %v569
          %v609 = vunpack.c.l.b16 %v570
          %v610 = vunpack.c.l.b16 %v571
          %v611 = vunpack.c.l.b16 %v572
          %v612 = vunpack.c.l.b16 %v573
          %v613 = vunpack.c.l.b16 %v574
          %v614 = vunpack.c.l.b16 %v575
          %v615 = vunpack.c.l.b16 %v576
          %v616 = vunpack.c.l.b16 %v577
          %v617 = vunpack.c.l.b16 %v578
          %v618 = vunpack.c.l.b16 %v579
          %v619 = vunpack.c.l.b16 %v580
          %v620 = vunpack.c.l.b16 %v581
          %v621 = vunpack.c.l.b16 %v582
          %v622 = vunpack.c.l.b16 %v583
          %v623 = vunpack.c.l.b16 %v584
          %v624 = vpack.c.b16 %v609, %v608
          %v625 = vpack.c.b16 %v611, %v610
          %v626 = vpack.c.b16 %v613, %v612
          %v627 = vpack.c.b16 %v615, %v614
          %v628 = vpack.c.b16 %v617, %v616
          %v629 = vpack.c.b16 %v619, %v618
          %v630 = vpack.c.b16 %v621, %v620
          %v631 = vpack.c.b16 %v623, %v622
          %640 = vmatprep.subr.bf16.mxu0 0
          %641 = vmatpush1.bf16.msra.mxu0 %v624
          %642 = vmatprep.subr.bf16.mxu0 0
          %643 = vmatpush1.bf16.msra.mxu0 %v625
          %644 = vmatprep.subr.bf16.mxu0 0
          %645 = vmatpush1.bf16.msra.mxu0 %v626
          %646 = vmatprep.subr.bf16.mxu0 0
          %647 = vmatpush1.bf16.msra.mxu0 %v627
          %648 = vmatprep.subr.bf16.mxu0 0
          %649 = vmatpush1.bf16.msra.mxu0 %v628
          %650 = vmatprep.subr.bf16.mxu0 0
          %651 = vmatpush1.bf16.msra.mxu0 %v629
          %652 = vmatprep.subr.bf16.mxu0 0
          %653 = vmatpush1.bf16.msra.mxu0 %v630
          %654 = vmatprep.subr.bf16.mxu0 0
          %655 = vmatpush1.bf16.msra.mxu0 %v631
          %656 = vmatprep.subr.bf16.mxu0 0
          %657 = vmatpush1.bf16.msra.mxu0 0
          %658 = vmatprep.subr.bf16.mxu0 0
          %659 = vmatpush1.bf16.msra.mxu0 0
          %660 = vmatprep.subr.bf16.mxu0 0
          %661 = vmatpush1.bf16.msra.mxu0 0
          %662 = vmatprep.subr.bf16.mxu0 0
          %663 = vmatpush1.bf16.msra.mxu0 0
          %664 = vmatprep.subr.bf16.mxu0 0
          %665 = vmatpush1.bf16.msra.mxu0 0
          %666 = vmatprep.subr.bf16.mxu0 0
          %667 = vmatpush1.bf16.msra.mxu0 0
          %668 = vmatprep.subr.bf16.mxu0 0
          %669 = vmatpush1.bf16.msra.mxu0 0
          %670 = vmatprep.subr.bf16.mxu0 0
          %671 = vmatpush1.bf16.msra.mxu0 0
          %672 = vmatprep.mubr.bf16.mxu0 0
          %673 = vmatmul.mubr.bf16.gmra.mrb[0].mxu0 %v565
          %v674 = vpop.f32.mrb[0].mxu0
          %v675 = vadd.f32 %v590, %v674
          %v676 = vpop.f32.mrb[0].mxu0
          %v677 = vpop.f32.mrb[0].mxu0
          %v678 = vadd.f32 %v590, %v677
          %v679 = vpop.f32.mrb[0].mxu0
          %680 = vmatprep.mubr.bf16.mxu0 0
          %681 = vmatmul.mubr.bf16.gmra.mrb[0].mxu0 %v566
          %v682 = vpop.f32.mrb[0].mxu0
          %v683 = vadd.f32 %v590, %v682
          %v684 = vpop.f32.mrb[0].mxu0
          %v685 = vpop.f32.mrb[0].mxu0
          %v686 = vadd.f32 %v590, %v685
          %v687 = vpop.f32.mrb[0].mxu0
          %688 = vmatprep.mubr.bf16.mxu0 0
          %689 = vmatmul.mubr.bf16.gmra.mrb[0].mxu0 %v567
          %v690 = vpop.f32.mrb[0].mxu0
          %v691 = vadd.f32 %v590, %v690
          %v692 = vpop.f32.mrb[0].mxu0
          %v693 = vpop.f32.mrb[0].mxu0
          %v694 = vadd.f32 %v590, %v693
          %v695 = vpop.f32.mrb[0].mxu0
          %696 = vmatprep.mubr.bf16.mxu0 0
          %697 = vmatmul.mubr.bf16.gmra.mrb[0].mxu0 %v568
          %v698 = vpop.f32.mrb[0].mxu0
          %v699 = vadd.f32 %v590, %v698
          %v700 = vpop.f32.mrb[0].mxu0
          %v701 = vpop.f32.mrb[0].mxu0
          %v702 = vadd.f32 %v590, %v701
          %v703 = vpop.f32.mrb[0].mxu0
          %704 = vdwg.mxu0
          %v705 = vmax.f32 %v675, 0.0
          %v706 = vmax.f32 %v678, 0.0
          %v707 = vmax.f32 %v683, 0.0
          %v708 = vmax.f32 %v686, 0.0
          %v709 = vmax.f32 %v691, 0.0
          %v710 = vmax.f32 %v694, 0.0
          %v711 = vmax.f32 %v699, 0.0
          %v712 = vmax.f32 %v702, 0.0
          %v713 = vpack.c.bf16 %v706, %v705
          %v714 = vpack.c.bf16 %v708, %v707
          %v715 = vpack.c.bf16 %v710, %v709
          %v716 = vpack.c.bf16 %v712, %v711
          %v717 = vld [vmem:[#allocation12] sm:$0xf]
          %v718 = vld [vmem:[#allocation12 + $0x4] sm:$0xf]
          %v719 = vld [vmem:[#allocation12 + $0x8] sm:$0xf]
          %v720 = vld [vmem:[#allocation12 + $0xc] sm:$0xf]
          %v721 = vld [vmem:[#allocation12 + $0x10] sm:$0xf]
          %v722 = vld [vmem:[#allocation12 + $0x14] sm:$0xf]
          %v723 = vld [vmem:[#allocation12 + $0x18] sm:$0xf]
          %v724 = vld [vmem:[#allocation12 + $0x1c] sm:$0xf]
          %v725 = vld [vmem:[#allocation12 + $0x20] sm:$0xf]
          %v726 = vld [vmem:[#allocation12 + $0x24] sm:$0xf]
          %v727 = vld [vmem:[#allocation12 + $0x28] sm:$0xf]
          %v728 = vld [vmem:[#allocation12 + $0x2c] sm:$0xf]
          %v729 = vld [vmem:[#allocation12 + $0x30] sm:$0xf]
          %v730 = vld [vmem:[#allocation12 + $0x34] sm:$0xf]
          %v731 = vld [vmem:[#allocation12 + $0x38] sm:$0xf]
          %v732 = vld [vmem:[#allocation12 + $0x3c] sm:$0xf]
          %v733 = vld [vmem:[%s7] sm:$0x1]
          %v735 = vlaneseq
          %v736 = vshrl.u32 %v735, 7
          %v737 = vsub.s32 0, %v736
          %v738 = vrot.slane %v733, %v737
          %v756 = vunpack.c.l.b16 %v717
          %v757 = vunpack.c.l.b16 %v718
          %v758 = vunpack.c.l.b16 %v719
          %v759 = vunpack.c.l.b16 %v720
          %v760 = vunpack.c.l.b16 %v721
          %v761 = vunpack.c.l.b16 %v722
          %v762 = vunpack.c.l.b16 %v723
          %v763 = vunpack.c.l.b16 %v724
          %v764 = vunpack.c.l.b16 %v725
          %v765 = vunpack.c.l.b16 %v726
          %v766 = vunpack.c.l.b16 %v727
          %v767 = vunpack.c.l.b16 %v728
          %v768 = vunpack.c.l.b16 %v729
          %v769 = vunpack.c.l.b16 %v730
          %v770 = vunpack.c.l.b16 %v731
          %v771 = vunpack.c.l.b16 %v732
          %v772 = vpack.c.b16 %v757, %v756
          %v773 = vpack.c.b16 %v759, %v758
          %v774 = vpack.c.b16 %v761, %v760
          %v775 = vpack.c.b16 %v763, %v762
          %v776 = vpack.c.b16 %v765, %v764
          %v777 = vpack.c.b16 %v767, %v766
          %v778 = vpack.c.b16 %v769, %v768
          %v779 = vpack.c.b16 %v771, %v770
          %788 = vmatprep.subr.bf16.mxu0 0
          %789 = vmatpush1.bf16.msra.mxu0 %v772
          %790 = vmatprep.subr.bf16.mxu0 0
          %791 = vmatpush1.bf16.msra.mxu0 %v773
          %792 = vmatprep.subr.bf16.mxu0 0
          %793 = vmatpush1.bf16.msra.mxu0 %v774
          %794 = vmatprep.subr.bf16.mxu0 0
          %795 = vmatpush1.bf16.msra.mxu0 %v775
          %796 = vmatprep.subr.bf16.mxu0 0
          %797 = vmatpush1.bf16.msra.mxu0 %v776
          %798 = vmatprep.subr.bf16.mxu0 0
          %799 = vmatpush1.bf16.msra.mxu0 %v777
          %800 = vmatprep.subr.bf16.mxu0 0
          %801 = vmatpush1.bf16.msra.mxu0 %v778
          %802 = vmatprep.subr.bf16.mxu0 0
          %803 = vmatpush1.bf16.msra.mxu0 %v779
          %804 = vmatprep.subr.bf16.mxu0 0
          %805 = vmatpush1.bf16.msra.mxu0 0
          %806 = vmatprep.subr.bf16.mxu0 0
          %807 = vmatpush1.bf16.msra.mxu0 0
          %808 = vmatprep.subr.bf16.mxu0 0
          %809 = vmatpush1.bf16.msra.mxu0 0
          %810 = vmatprep.subr.bf16.mxu0 0
          %811 = vmatpush1.bf16.msra.mxu0 0
          %812 = vmatprep.subr.bf16.mxu0 0
          %813 = vmatpush1.bf16.msra.mxu0 0
          %814 = vmatprep.subr.bf16.mxu0 0
          %815 = vmatpush1.bf16.msra.mxu0 0
          %816 = vmatprep.subr.bf16.mxu0 0
          %817 = vmatpush1.bf16.msra.mxu0 0
          %818 = vmatprep.subr.bf16.mxu0 0
          %819 = vmatpush1.bf16.msra.mxu0 0
          %820 = vmatprep.mubr.bf16.mxu0 0
          %821 = vmatmul.mubr.bf16.gmra.mrb[0].mxu0 %v713
          %v822 = vpop.f32.mrb[0].mxu0
          %v823 = vadd.f32 %v738, %v822
          %v824 = vpop.f32.mrb[0].mxu0
          %v825 = vpop.f32.mrb[0].mxu0
          %v826 = vadd.f32 %v738, %v825
          %v827 = vpop.f32.mrb[0].mxu0
          %828 = vmatprep.mubr.bf16.mxu0 0
          %829 = vmatmul.mubr.bf16.gmra.mrb[0].mxu0 %v714
          %v830 = vpop.f32.mrb[0].mxu0
          %v831 = vadd.f32 %v738, %v830
          %v832 = vpop.f32.mrb[0].mxu0
          %v833 = vpop.f32.mrb[0].mxu0
          %v834 = vadd.f32 %v738, %v833
          %v835 = vpop.f32.mrb[0].mxu0
          %836 = vmatprep.mubr.bf16.mxu0 0
          %837 = vmatmul.mubr.bf16.gmra.mrb[0].mxu0 %v715
          %v838 = vpop.f32.mrb[0].mxu0
          %v839 = vadd.f32 %v738, %v838
          %v840 = vpop.f32.mrb[0].mxu0
          %v841 = vpop.f32.mrb[0].mxu0
          %v842 = vadd.f32 %v738, %v841
          %v843 = vpop.f32.mrb[0].mxu0
          %844 = vmatprep.mubr.bf16.mxu0 0
          %845 = vmatmul.mubr.bf16.gmra.mrb[0].mxu0 %v716
          %v846 = vpop.f32.mrb[0].mxu0
          %v847 = vadd.f32 %v738, %v846
          %v848 = vpop.f32.mrb[0].mxu0
          %v849 = vpop.f32.mrb[0].mxu0
          %v850 = vadd.f32 %v738, %v849
          %v851 = vpop.f32.mrb[0].mxu0
          %852 = vdwg.mxu0
          %v853 = vmax.f32 %v823, 0.0
          %v854 = vmax.f32 %v826, 0.0
          %v855 = vmax.f32 %v831, 0.0
          %v856 = vmax.f32 %v834, 0.0
          %v857 = vmax.f32 %v839, 0.0
          %v858 = vmax.f32 %v842, 0.0
          %v859 = vmax.f32 %v847, 0.0
          %v860 = vmax.f32 %v850, 0.0
          %v861 = vmul.f32 %v853, %v853
          %v862 = vmul.f32 %v854, %v854
          %v863 = vmul.f32 %v855, %v855
          %v864 = vmul.f32 %v856, %v856
          %v865 = vmul.f32 %v857, %v857
          %v866 = vmul.f32 %v858, %v858
          %v867 = vmul.f32 %v859, %v859
          %v868 = vmul.f32 %v860, %v860
          %869 = vadd.xlane.f32.xlu0 %v861
          %v870 = vpop.xlane.xlu0 %869
          %871 = vadd.xlane.f32.xlu0 %v862
          %v872 = vpop.xlane.xlu0 %871
          %873 = vadd.xlane.f32.xlu0 %v863
          %v874 = vpop.xlane.xlu0 %873
          %875 = vadd.xlane.f32.xlu0 %v864
          %v876 = vpop.xlane.xlu0 %875
          %877 = vadd.xlane.f32.xlu0 %v865
          %v878 = vpop.xlane.xlu0 %877
          %879 = vadd.xlane.f32.xlu0 %v866
          %v880 = vpop.xlane.xlu0 %879
          %881 = vadd.xlane.f32.xlu0 %v867
          %v882 = vpop.xlane.xlu0 %881
          %883 = vadd.xlane.f32.xlu0 %v868
          %v884 = vpop.xlane.xlu0 %883
          %v885 = vmax.f32 %v870, 1e-24
          %v886 = vmax.f32 %v872, 1e-24
          %v887 = vmax.f32 %v874, 1e-24
          %v888 = vmax.f32 %v876, 1e-24
          %v889 = vmax.f32 %v878, 1e-24
          %v890 = vmax.f32 %v880, 1e-24
          %v891 = vmax.f32 %v882, 1e-24
          %v892 = vmax.f32 %v884, 1e-24
          %v893 = vrsqrt.pop %v885
          %v894 = vrsqrt.pop %v886
          %v895 = vrsqrt.pop %v887
          %v896 = vrsqrt.pop %v888
          %v897 = vrsqrt.pop %v889
          %v898 = vrsqrt.pop %v890
          %v899 = vrsqrt.pop %v891
          %v900 = vrsqrt.pop %v892
          %v901 = vmul.f32 %v853, %v893
          %v902 = vmul.f32 %v854, %v894
          %v903 = vmul.f32 %v855, %v895
          %v904 = vmul.f32 %v856, %v896
          %v905 = vmul.f32 %v857, %v897
          %v906 = vmul.f32 %v858, %v898
          %v907 = vmul.f32 %v859, %v899
          %v908 = vmul.f32 %v860, %v900
          %v909 = vpack.c.bf16 %v902, %v901
          %v910 = vpack.c.bf16 %v904, %v903
          %v911 = vpack.c.bf16 %v906, %v905
          %v912 = vpack.c.bf16 %v908, %v907
          %v917 = vunpack.c.l.b16 %v909
          %v918 = vunpack.c.h.b16 %v909
          %v919 = vunpack.c.l.b16 %v910
          %v920 = vunpack.c.h.b16 %v910
          %v921 = vunpack.c.l.b16 %v911
          %v922 = vunpack.c.h.b16 %v911
          %v923 = vunpack.c.l.b16 %v912
          %v924 = vunpack.c.h.b16 %v912
          %v925 = vpack.c.b16 %v917, %v917
          %v926 = vpack.c.b16 %v918, %v918
          %v927 = vpack.c.b16 %v919, %v919
          %v928 = vpack.c.b16 %v920, %v920
          %v929 = vpack.c.b16 %v921, %v921
          %v930 = vpack.c.b16 %v922, %v922
          %v931 = vpack.c.b16 %v923, %v923
          %v932 = vpack.c.b16 %v924, %v924
          %941 = vst [vmem:[%s344] sm:$0xf] %v925
          %942 = vst [vmem:[%s344 + $0x4] sm:$0xf] %v926
          %943 = vst [vmem:[%s344 + $0x8] sm:$0xf] %v927
          %944 = vst [vmem:[%s344 + $0xc] sm:$0xf] %v928
          %945 = vst [vmem:[%s344 + $0x10] sm:$0xf] %v929
          %946 = vst [vmem:[%s344 + $0x14] sm:$0xf] %v930
          %947 = vst [vmem:[%s344 + $0x18] sm:$0xf] %v931
          %948 = vst [vmem:[%s344 + $0x1c] sm:$0xf] %v932
        $region72: #{tpu_custom_call.1} parent=43 // pred_fallthru
          _
        %s949 = sand.u32 %s192, 1
        %s950 = scalar_lea.sflag [#allocation8], %s949
        %s951 = sand.u32 %s192, 1
        %s952 = smul.addr %s951, 32
        %s953 = scalar_lea.vmem [#allocation14], %s952
        // Predicated region
        $region73: #{tpu_custom_call.1} parent=43 // pred_check
          %p954 = pneg %p202
        $region74: #{tpu_custom_call.1} parent=43 // pred_check_branch
          %956 = sbr.rel (%p954) target = $region76
        $region75: #{tpu_custom_call.1} parent=43 // pred_region
          %s957 = smul.u32 8, %s39
          %s959 = ssub.s32 512, 512
          %960 = vsyncadd %s950, %s959
          %s961 = smul.addr %s957, 64
          %s962 = scalar_lea.hbm %s8, %s961
          %s963 = sshll.u32 %s953, 4
          %s964 = int_to_ptr.vmem [resolvable:$true] %s963
          %969 = dma.vmem_to_hbm [thread:$0]  %s964, 512, %s962, %s950, 64, 64, 4
        $region76: #{tpu_custom_call.1} parent=43 // pred_fallthru
          _
      $region44: #{tpu_custom_call.1} parent=5 // pred_fallthru
        _
      %p970 = scmp.le.s32.totalorder 2, %s30
      // Predicated region
      $region77: #{tpu_custom_call.1} parent=5 // pred_check
        %p971 = pneg %p970
      $region78: #{tpu_custom_call.1} parent=5 // pred_check_branch
        %973 = sbr.rel (%p971) target = $region80
      $region79: #{tpu_custom_call.1} parent=5 // pred_region
        %s974 = ssub.s32 %s30, 2
        // Predicated region
        $region81: #{tpu_custom_call.1} parent=79 // pred_check
          %p975 = pneg %p208
        $region82: #{tpu_custom_call.1} parent=79 // pred_check_branch
          %977 = sbr.rel (%p975) target = $region84
        $region83: #{tpu_custom_call.1} parent=79 // pred_region
          %s978 = sand.u32 %s193, 1
          %s979 = scalar_lea.sflag [#allocation8], %s978
          %s980 = sand.u32 %s193, 1
          %s981 = smul.addr %s980, 32
          %s982 = scalar_lea.vmem [#allocation14], %s981
          %983 = dma.done %s979, 512
        $region84: #{tpu_custom_call.1} parent=79 // pred_fallthru
          _
      $region80: #{tpu_custom_call.1} parent=5 // pred_fallthru
        _
    $region6: #{tpu_custom_call.1} parent=1 // loop_footer
      %s34 = sadd.s32 1, %s30
    $region7: #{tpu_custom_call.1} parent=1 // loop_footer_branch
      %29 = sbr.rel target = $region3
    $region8: #{tpu_custom_call.1} parent=1 // loop_exit
      _
    %984 = vsyncpa [#allocation7], 1
    %s985 = scalar_lea.sflag [#allocation7], 1
    %986 = vsyncpa %s985, 1
    %987 = vsyncpa [#allocation10], 1
    %988 = vsyncpa [#allocation13], 1
    %989 = vsyncpa [#allocation8], 1
    %s990 = scalar_lea.sflag [#allocation8], 1
    %991 = vsyncpa %s990, 1

</llo_original>
